<compile_context>
chip_gen: v5e
topology: v5e:2x2
jax: 0.10.0
libtpu: 0.0.40
codegen_flags: <defaults>
</compile_context>

<pallas_src>
import math
import jax
import jax.numpy as jnp
from jax.experimental import pallas as pl
from jax.experimental.pallas import tpu as pltpu


def _sigmoid(x):
    # One EUP op instead of exp + reciprocal; mathematically identical.
    return 0.5 * (jnp.tanh(0.5 * x) + 1.0)


def _mat_gru_cell_kernel(q_ref, w_stack_ref, uh_ref, b_stack_ref, out_ref,
                         *, rows):
    q = q_ref[...]

    # Single stacked MXU op for all three q-input paths:
    #   rows 0:rows      -> (W_u + U_u) @ q   (update gate pre-act, minus bias)
    #   rows rows:2*rows -> (W_r + U_r) @ q   (reset  gate pre-act, minus bias)
    #   rows 2*rows:3r   ->  W_h @ q          (htilda x-path,       minus bias)
    pre = jnp.dot(w_stack_ref[...], q,
                  preferred_element_type=jnp.float32) + b_stack_ref[...]

    update = _sigmoid(pre[0:rows, :])
    reset = _sigmoid(pre[rows:2 * rows, :])

    # Only matmul that depends on `reset`.
    h_pre = pre[2 * rows:3 * rows, :] + jnp.dot(
        uh_ref[...], reset * q, preferred_element_type=jnp.float32)
    h_cap = jnp.tanh(h_pre)

    # (1 - update) * q + update * h_cap  ==  q + update * (h_cap - q)
    out_ref[...] = (q + update * (h_cap - q)).astype(out_ref.dtype)


def mat_gru_cell(prev_Q, params):
    """prev_Q: (rows, cols) f32. params: dict of per-gate W/U/b. Returns new_Q."""
    rows, cols = prev_Q.shape
    f32 = jnp.float32

    # Pre-sum / stack weights and biases in the wrapper (one-time, outside the
    # kernel's critical path; with jit these fold into constants per param set).
    w_stack = jnp.concatenate(
        [params["W_u"].astype(f32) + params["U_u"].astype(f32),
         params["W_r"].astype(f32) + params["U_r"].astype(f32),
         params["W_h"].astype(f32)],
        axis=0)                                   # (3*rows, rows)
    b_stack = jnp.concatenate(
        [params["b_u"].astype(f32),
         params["b_r"].astype(f32),
         params["b_h"].astype(f32)],
        axis=0)                                   # (3*rows, cols)
    u_h = params["U_h"].astype(f32)               # (rows, rows)

    spec_q = pl.BlockSpec((rows, cols), lambda: (0, 0))
    spec_w = pl.BlockSpec((3 * rows, rows), lambda: (0, 0))
    spec_uh = pl.BlockSpec((rows, rows), lambda: (0, 0))
    spec_b = pl.BlockSpec((3 * rows, cols), lambda: (0, 0))

    import functools
    kernel = functools.partial(_mat_gru_cell_kernel, rows=rows)

    return pl.pallas_call(
        kernel,
        out_shape=jax.ShapeDtypeStruct((rows, cols), prev_Q.dtype),
        grid=(),
        in_specs=[spec_q, spec_w, spec_uh, spec_b],
        out_specs=spec_q,
    )(prev_Q.astype(f32), w_stack, u_h, b_stack)


def init_params(key, rows, cols, dtype=jnp.float32):
    """Deterministic init matching mat_GRU_gate.reset_param: U(-stdv, stdv),
    stdv = 1/sqrt(num_cols_of_W) = 1/sqrt(rows); biases are zeros."""
    stdv = 1.0 / math.sqrt(rows)
    keys = jax.random.split(key, 6)
    params = {
        "W_u": jax.random.uniform(keys[0], (rows, rows), dtype, -stdv, stdv),
        "U_u": jax.random.uniform(keys[1], (rows, rows), dtype, -stdv, stdv),
        "b_u": jnp.zeros((rows, cols), dtype),
        "W_r": jax.random.uniform(keys[2], (rows, rows), dtype, -stdv, stdv),
        "U_r": jax.random.uniform(keys[3], (rows, rows), dtype, -stdv, stdv),
        "b_r": jnp.zeros((rows, cols), dtype),
        "W_h": jax.random.uniform(keys[4], (rows, rows), dtype, -stdv, stdv),
        "U_h": jax.random.uniform(keys[5], (rows, rows), dtype, -stdv, stdv),
        "b_h": jnp.zeros((rows, cols), dtype),
    }
    return params


def _reference(prev_Q, p):
    """Pure-JAX reference mirroring the PyTorch forward (separate W/U)."""
    q = prev_Q
    update = jax.nn.sigmoid(p["W_u"] @ q + p["U_u"] @ q + p["b_u"])
    reset = jax.nn.sigmoid(p["W_r"] @ q + p["U_r"] @ q + p["b_r"])
    h_cap = jnp.tanh(p["W_h"] @ q + p["U_h"] @ (reset * q) + p["b_h"])
    return (1.0 - update) * q + update * h_cap


if __name__ == "__main__":
    rows, cols = 32, 16   # args.rows, args.cols (small, per module defaults)
    key = jax.random.PRNGKey(0)
    k_q, k_p = jax.random.split(key)

    prev_Q = jax.random.normal(k_q, (rows, cols), jnp.float32)
    params = init_params(k_p, rows, cols)

    new_Q = mat_gru_cell(prev_Q, params)
    new_Q = jax.block_until_ready(new_Q)

    ref = _reference(prev_Q, params)
    assert new_Q.shape == (rows, cols)
    assert jnp.allclose(new_Q, ref, atol=1e-5, rtol=1e-5), "mismatch vs reference"

    print("KERNEL_OK")
</pallas_src>

<mosaic_0001>
module attributes {stable_mosaic.version = 11 : i64} {
  func.func @_mat_gru_cell_kernel(%arg0: memref<32x16xf32, #tpu.memory_space<vmem>>, %arg1: memref<96x32xf32, #tpu.memory_space<vmem>>, %arg2: memref<32x32xf32, #tpu.memory_space<vmem>>, %arg3: memref<96x16xf32, #tpu.memory_space<vmem>>, %arg4: memref<32x16xf32, #tpu.memory_space<vmem>>) attributes {dimension_semantics = [], scalar_prefetch = 0 : i64, scratch_operands = 0 : i64, tpu.core_type = #tpu.core_type<tc>} {
    %c0 = arith.constant 0 : index
    %c0_0 = arith.constant 0 : index
    %0 = vector.load %arg0[%c0, %c0_0] : memref<32x16xf32, #tpu.memory_space<vmem>>, vector<32x16xf32>
    %c0_1 = arith.constant 0 : index
    %c0_2 = arith.constant 0 : index
    %1 = vector.load %arg1[%c0_1, %c0_2] : memref<96x32xf32, #tpu.memory_space<vmem>>, vector<96x32xf32>
    %cst = arith.constant dense<0.000000e+00> : vector<96x16xf32>
    %2 = tpu.matmul %1, %0, %cst {dimension_numbers = #tpu.dot_dimension_numbers<[1], [0], [0], [1], [0, 0, 1, 1], [], []>} : vector<96x32xf32>, vector<32x16xf32>, vector<96x16xf32> -> vector<96x16xf32>
    %c0_3 = arith.constant 0 : index
    %c0_4 = arith.constant 0 : index
    %3 = vector.load %arg3[%c0_3, %c0_4] : memref<96x16xf32, #tpu.memory_space<vmem>>, vector<96x16xf32>
    %4 = arith.addf %2, %3 : vector<96x16xf32>
    %5 = vector.extract_strided_slice %4 {offsets = [0, 0], sizes = [32, 16], strides = [1, 1]} : vector<96x16xf32> to vector<32x16xf32>
    %cst_5 = arith.constant 5.000000e-01 : f32
    %6 = vector.broadcast %cst_5 : f32 to vector<32x16xf32>
    %7 = arith.mulf %6, %5 : vector<32x16xf32>
    %8 = math.tanh %7 : vector<32x16xf32>
    %cst_6 = arith.constant 1.000000e+00 : f32
    %9 = vector.broadcast %cst_6 : f32 to vector<32x16xf32>
    %10 = arith.addf %8, %9 : vector<32x16xf32>
    %cst_7 = arith.constant 5.000000e-01 : f32
    %11 = vector.broadcast %cst_7 : f32 to vector<32x16xf32>
    %12 = arith.mulf %11, %10 : vector<32x16xf32>
    %13 = vector.extract_strided_slice %4 {offsets = [32, 0], sizes = [32, 16], strides = [1, 1]} : vector<96x16xf32> to vector<32x16xf32>
    %cst_8 = arith.constant 5.000000e-01 : f32
    %14 = vector.broadcast %cst_8 : f32 to vector<32x16xf32>
    %15 = arith.mulf %14, %13 : vector<32x16xf32>
    %16 = math.tanh %15 : vector<32x16xf32>
    %cst_9 = arith.constant 1.000000e+00 : f32
    %17 = vector.broadcast %cst_9 : f32 to vector<32x16xf32>
    %18 = arith.addf %16, %17 : vector<32x16xf32>
    %cst_10 = arith.constant 5.000000e-01 : f32
    %19 = vector.broadcast %cst_10 : f32 to vector<32x16xf32>
    %20 = arith.mulf %19, %18 : vector<32x16xf32>
    %21 = vector.extract_strided_slice %4 {offsets = [64, 0], sizes = [32, 16], strides = [1, 1]} : vector<96x16xf32> to vector<32x16xf32>
    %c0_11 = arith.constant 0 : index
    %c0_12 = arith.constant 0 : index
    %22 = vector.load %arg2[%c0_11, %c0_12] : memref<32x32xf32, #tpu.memory_space<vmem>>, vector<32x32xf32>
    %23 = arith.mulf %20, %0 : vector<32x16xf32>
    %cst_13 = arith.constant dense<0.000000e+00> : vector<32x16xf32>
    %24 = tpu.matmul %22, %23, %cst_13 {dimension_numbers = #tpu.dot_dimension_numbers<[1], [0], [0], [1], [0, 0, 1, 1], [], []>} : vector<32x32xf32>, vector<32x16xf32>, vector<32x16xf32> -> vector<32x16xf32>
    %25 = arith.addf %21, %24 : vector<32x16xf32>
    %26 = math.tanh %25 : vector<32x16xf32>
    %27 = arith.subf %26, %0 : vector<32x16xf32>
    %28 = arith.mulf %12, %27 : vector<32x16xf32>
    %29 = arith.addf %0, %28 : vector<32x16xf32>
    %c0_14 = arith.constant 0 : index
    %c0_15 = arith.constant 0 : index
    %30 = vector.load %arg4[%c0_14, %c0_15] : memref<32x16xf32, #tpu.memory_space<vmem>>, vector<32x16xf32>
    tpu.vector_store %arg4[%c0_14, %c0_15], %29 {strides = array<i32>} : memref<32x16xf32, #tpu.memory_space<vmem>>, vector<32x16xf32>,
    return
  }
}

</mosaic_0001>

<llo_original>
// kernel: tpu_custom_call.1
$region0: #{tpu_custom_call.1}
  #allocation0 [shape = 'u32[]', space=smem, size = 0x4, offset = 0x4, fixed_abs, tag = 'smem constant byte address 0x4 - core index']
  #allocation1 [shape = 'u32[72,128]{1,0:T(1,128)}', space=vmem, size = 0x9000, scoped, tag = 'internal scratch']
  %s0 = inlined_call_operand.vmem [shape: f32[32,16], index: 0, kind: input, shape index: {}]
  %s1 = inlined_call_operand.vmem [shape: f32[96,32], index: 1, kind: input, shape index: {}]
  %s2 = inlined_call_operand.vmem [shape: f32[32,32], index: 2, kind: input, shape index: {}]
  %s3 = inlined_call_operand.vmem [shape: f32[96,16], index: 3, kind: input, shape index: {}]
  %s4 = inlined_call_operand.vmem [shape: f32[32,16], index: 4, kind: output, shape index: {}]
  %s5 = sld [smem:[#allocation0]]
  $region26: #{tpu_custom_call.1} parent=0
    _
  %s7 = ssub.s32 1, %s5
  %s8 = scalar_select 0, %s7, %s5
  // Predicated region
  $region2: #{tpu_custom_call.1} parent=0 // pred_check
    _
  $region3: #{tpu_custom_call.1} parent=0 // pred_check_branch
    %10 = sbr.rel (0) target = $region5
  $region4: #{tpu_custom_call.1} parent=0 // pred_region
    _
  $region5: #{tpu_custom_call.1} parent=0 // pred_fallthru
    _
  // Predicated region
  $region6: #{tpu_custom_call.1} parent=0 // pred_check
    _
  $region7: #{tpu_custom_call.1} parent=0 // pred_check_branch
    %12 = sbr.rel (0) target = $region9
  $region8: #{tpu_custom_call.1} parent=0 // pred_region
    _
  $region9: #{tpu_custom_call.1} parent=0 // pred_fallthru
    _
  // Predicated region
  $region10: #{tpu_custom_call.1} parent=0 // pred_check
    _
  $region11: #{tpu_custom_call.1} parent=0 // pred_check_branch
    %14 = sbr.rel (0) target = $region13
  $region12: #{tpu_custom_call.1} parent=0 // pred_region
    _
  $region13: #{tpu_custom_call.1} parent=0 // pred_fallthru
    _
  // Predicated region
  $region14: #{tpu_custom_call.1} parent=0 // pred_check
    _
  $region15: #{tpu_custom_call.1} parent=0 // pred_check_branch
    %16 = sbr.rel (0) target = $region17
  $region16: #{tpu_custom_call.1} parent=0 // pred_region
    _
  $region17: #{tpu_custom_call.1} parent=0 // pred_fallthru
    _
  %v17 = vld [vmem:[%s0] sm:$0xff]
  %v18 = vld [vmem:[%s0 + $0x8] sm:$0xff]
  %v19 = vld [vmem:[%s0 + $0x10] sm:$0xff]
  %v20 = vld [vmem:[%s0 + $0x18] sm:$0xff]
  %v21 = vld [vmem:[%s1] sm:$0xff]
  %v22 = vld [vmem:[%s1 + $0x8] sm:$0xff]
  %v23 = vld [vmem:[%s1 + $0x10] sm:$0xff]
  %v24 = vld [vmem:[%s1 + $0x18] sm:$0xff]
  %v25 = vld [vmem:[%s1 + $0x20] sm:$0xff]
  %v26 = vld [vmem:[%s1 + $0x28] sm:$0xff]
  %v27 = vld [vmem:[%s1 + $0x30] sm:$0xff]
  %v28 = vld [vmem:[%s1 + $0x38] sm:$0xff]
  %v29 = vld [vmem:[%s1 + $0x40] sm:$0xff]
  %v30 = vld [vmem:[%s1 + $0x48] sm:$0xff]
  %v31 = vld [vmem:[%s1 + $0x50] sm:$0xff]
  %v32 = vld [vmem:[%s1 + $0x58] sm:$0xff]
  %v33 = vld [vmem:[%s3] sm:$0xff]
  %v34 = vld [vmem:[%s3 + $0x8] sm:$0xff]
  %v35 = vld [vmem:[%s3 + $0x10] sm:$0xff]
  %v36 = vld [vmem:[%s3 + $0x18] sm:$0xff]
  %v37 = vld [vmem:[%s3 + $0x20] sm:$0xff]
  %v38 = vld [vmem:[%s3 + $0x28] sm:$0xff]
  %v39 = vld [vmem:[%s3 + $0x30] sm:$0xff]
  %v40 = vld [vmem:[%s3 + $0x38] sm:$0xff]
  %v41 = vld [vmem:[%s3 + $0x40] sm:$0xff]
  %v42 = vld [vmem:[%s3 + $0x48] sm:$0xff]
  %v43 = vld [vmem:[%s3 + $0x50] sm:$0xff]
  %v44 = vld [vmem:[%s3 + $0x58] sm:$0xff]
  %vm45 = vcmask 261120
  %v47 = vsel %vm45, %v21, 0
  %v50 = vsel %vm45, %v22, 0
  %v53 = vsel %vm45, %v23, 0
  %v56 = vsel %vm45, %v24, 0
  %v59 = vsel %vm45, %v25, 0
  %v62 = vsel %vm45, %v26, 0
  %v65 = vsel %vm45, %v27, 0
  %v68 = vsel %vm45, %v28, 0
  %v71 = vsel %vm45, %v29, 0
  %v74 = vsel %vm45, %v30, 0
  %v77 = vsel %vm45, %v31, 0
  %v80 = vsel %vm45, %v32, 0
  %82 = vmatpush.msra.mxu0 0.0
  %83 = vmatpush.msra.mxu0 0.0
  %84 = vmatpush.msra.mxu0 0.0
  %85 = vmatpush.msra.mxu0 0.0
  %86 = vmatpush.msra.mxu0 0.0
  %87 = vmatpush.msra.mxu0 0.0
  %88 = vmatpush.msra.mxu0 0.0
  %89 = vmatpush.msra.mxu0 0.0
  %90 = vmatpush.msra.mxu0 0.0
  %91 = vmatpush.msra.mxu0 0.0
  %92 = vmatpush.msra.mxu0 0.0
  %93 = vmatpush.msra.mxu0 0.0
  %94 = vmatpush.msra.mxu0 %v20
  %95 = vmatpush.msra.mxu0 %v19
  %96 = vmatpush.msra.mxu0 %v18
  %97 = vmatpush.msra.mxu0 %v17
  %98 = vmatmul.f32.gmra.mxu0 %v47
  %v99 = vpop.f32.mrf.mxu0
  %v100 = vadd.f32 %v33, %v99
  %101 = vmatmul.f32.gmra.mxu0 %v50
  %v102 = vpop.f32.mrf.mxu0
  %v103 = vadd.f32 %v34, %v102
  %104 = vmatmul.f32.gmra.mxu0 %v53
  %v105 = vpop.f32.mrf.mxu0
  %v106 = vadd.f32 %v35, %v105
  %107 = vmatmul.f32.gmra.mxu0 %v56
  %v108 = vpop.f32.mrf.mxu0
  %v109 = vadd.f32 %v36, %v108
  %110 = vmatmul.f32.gmra.mxu0 %v59
  %v111 = vpop.f32.mrf.mxu0
  %v112 = vadd.f32 %v37, %v111
  %113 = vmatmul.f32.gmra.mxu0 %v62
  %v114 = vpop.f32.mrf.mxu0
  %v115 = vadd.f32 %v38, %v114
  %116 = vmatmul.f32.gmra.mxu0 %v65
  %v117 = vpop.f32.mrf.mxu0
  %v118 = vadd.f32 %v39, %v117
  %119 = vmatmul.f32.gmra.mxu0 %v68
  %v120 = vpop.f32.mrf.mxu0
  %v121 = vadd.f32 %v40, %v120
  %122 = vmatmul.f32.gmra.mxu0 %v71
  %v123 = vpop.f32.mrf.mxu0
  %v124 = vadd.f32 %v41, %v123
  %125 = vmatmul.f32.gmra.mxu0 %v74
  %v126 = vpop.f32.mrf.mxu0
  %v127 = vadd.f32 %v42, %v126
  %128 = vmatmul.f32.gmra.mxu0 %v77
  %v129 = vpop.f32.mrf.mxu0
  %v130 = vadd.f32 %v43, %v129
  %131 = vmatmul.f32.gmra.mxu0 %v80
  %v132 = vpop.f32.mrf.mxu0
  %v133 = vadd.f32 %v44, %v132
  %134 = vdwg.mxu0
  %v135 = vmul.f32 %v100, 0.5
  %v136 = vmul.f32 %v103, 0.5
  %v137 = vmul.f32 %v106, 0.5
  %v138 = vmul.f32 %v109, 0.5
  %v139 = vtanh.pop %v135
  %v140 = vtanh.pop %v136
  %v141 = vtanh.pop %v137
  %v142 = vtanh.pop %v138
  %v143 = vadd.f32 %v139, 1.0
  %v144 = vadd.f32 %v140, 1.0
  %v145 = vadd.f32 %v141, 1.0
  %v146 = vadd.f32 %v142, 1.0
  %v147 = vmul.f32 %v143, 0.5
  %v148 = vmul.f32 %v144, 0.5
  %v149 = vmul.f32 %v145, 0.5
  %v150 = vmul.f32 %v146, 0.5
  %v151 = vmul.f32 %v112, 0.5
  %v152 = vmul.f32 %v115, 0.5
  %v153 = vmul.f32 %v118, 0.5
  %v154 = vmul.f32 %v121, 0.5
  %v155 = vtanh.pop %v151
  %v156 = vtanh.pop %v152
  %v157 = vtanh.pop %v153
  %v158 = vtanh.pop %v154
  %v159 = vadd.f32 %v155, 1.0
  %v160 = vadd.f32 %v156, 1.0
  %v161 = vadd.f32 %v157, 1.0
  %v162 = vadd.f32 %v158, 1.0
  %v163 = vmul.f32 %v159, 0.5
  %v164 = vmul.f32 %v160, 0.5
  %v165 = vmul.f32 %v161, 0.5
  %v166 = vmul.f32 %v162, 0.5
  %v167 = vld [vmem:[%s2] sm:$0xff]
  %v168 = vld [vmem:[%s2 + $0x8] sm:$0xff]
  %v169 = vld [vmem:[%s2 + $0x10] sm:$0xff]
  %v170 = vld [vmem:[%s2 + $0x18] sm:$0xff]
  %v171 = vmul.f32 %v163, %v17
  %v172 = vmul.f32 %v164, %v18
  %v173 = vmul.f32 %v165, %v19
  %v174 = vmul.f32 %v166, %v20
  %v176 = vsel %vm45, %v167, 0
  %v179 = vsel %vm45, %v168, 0
  %v182 = vsel %vm45, %v169, 0
  %v185 = vsel %vm45, %v170, 0
  %187 = vmatpush.msra.mxu0 0.0
  %188 = vmatpush.msra.mxu0 0.0
  %189 = vmatpush.msra.mxu0 0.0
  %190 = vmatpush.msra.mxu0 0.0
  %191 = vmatpush.msra.mxu0 0.0
  %192 = vmatpush.msra.mxu0 0.0
  %193 = vmatpush.msra.mxu0 0.0
  %194 = vmatpush.msra.mxu0 0.0
  %195 = vmatpush.msra.mxu0 0.0
  %196 = vmatpush.msra.mxu0 0.0
  %197 = vmatpush.msra.mxu0 0.0
  %198 = vmatpush.msra.mxu0 0.0
  %199 = vmatpush.msra.mxu0 %v174
  %200 = vmatpush.msra.mxu0 %v173
  %201 = vmatpush.msra.mxu0 %v172
  %202 = vmatpush.msra.mxu0 %v171
  %203 = vmatmul.f32.gmra.mxu0 %v176
  %v204 = vpop.f32.mrf.mxu0
  %v205 = vadd.f32 0.0, %v204
  %206 = vmatmul.f32.gmra.mxu0 %v179
  %v207 = vpop.f32.mrf.mxu0
  %v208 = vadd.f32 0.0, %v207
  %209 = vmatmul.f32.gmra.mxu0 %v182
  %v210 = vpop.f32.mrf.mxu0
  %v211 = vadd.f32 0.0, %v210
  %212 = vmatmul.f32.gmra.mxu0 %v185
  %v213 = vpop.f32.mrf.mxu0
  %v214 = vadd.f32 0.0, %v213
  %215 = vdwg.mxu0
  %v216 = vadd.f32 %v124, %v205
  %v217 = vadd.f32 %v127, %v208
  %v218 = vadd.f32 %v130, %v211
  %v219 = vadd.f32 %v133, %v214
  %v220 = vtanh.pop %v216
  %v221 = vtanh.pop %v217
  %v222 = vtanh.pop %v218
  %v223 = vtanh.pop %v219
  %v224 = vsub.f32 %v220, %v17
  %v225 = vsub.f32 %v221, %v18
  %v226 = vsub.f32 %v222, %v19
  %v227 = vsub.f32 %v223, %v20
  %v228 = vmul.f32 %v147, %v224
  %v229 = vmul.f32 %v148, %v225
  %v230 = vmul.f32 %v149, %v226
  %v231 = vmul.f32 %v150, %v227
  %v232 = vadd.f32 %v17, %v228
  %v233 = vadd.f32 %v18, %v229
  %v234 = vadd.f32 %v19, %v230
  %v235 = vadd.f32 %v20, %v231
  %vm236 = vcmask 130048
  %237 = vst.msk [vmem:[%s4] sm:$0xff] %vm236, %v232
  %238 = vst.msk [vmem:[%s4 + $0x8] sm:$0xff] %vm236, %v233
  %239 = vst.msk [vmem:[%s4 + $0x10] sm:$0xff] %vm236, %v234
  %240 = vst.msk [vmem:[%s4 + $0x18] sm:$0xff] %vm236, %v235
  // Predicated region
  $region18: #{tpu_custom_call.1} parent=0 // pred_check
    _
  $region19: #{tpu_custom_call.1} parent=0 // pred_check_branch
    %242 = sbr.rel (0) target = $region21
  $region20: #{tpu_custom_call.1} parent=0 // pred_region
    _
  $region21: #{tpu_custom_call.1} parent=0 // pred_fallthru
    _
  // Predicated region
  $region22: #{tpu_custom_call.1} parent=0 // pred_check
    _
  $region23: #{tpu_custom_call.1} parent=0 // pred_check_branch
    %244 = sbr.rel (0) target = $region25
  $region24: #{tpu_custom_call.1} parent=0 // pred_region
    _
  $region25: #{tpu_custom_call.1} parent=0 // pred_fallthru
    _

</llo_original>
